<compile_context>
chip_gen: v5e
topology: v5e:2x2
jax: 0.10.0
libtpu: 0.0.40
codegen_flags: <defaults>
</compile_context>

<pallas_src>
import jax
import jax.numpy as jnp
from jax import lax
from jax.experimental import pallas as pl
from jax.experimental.pallas import tpu as pltpu


TAPS = tuple((dy, dx) for dy in (-1, 0, 1) for dx in (-1, 0, 1))

_ROLL_LIKE_JNP = None  # cached result of the pltpu.roll direction probe


def _roll_like_jnp():
    """True iff pltpu.roll(x, s, axis) == jnp.roll(x, s, axis).

    One tiny cached probe guards against the shift-sign convention; the main
    kernel picks the static shift sign accordingly, so it is correct either
    way."""
    global _ROLL_LIKE_JNP
    if _ROLL_LIKE_JNP is None:
        try:
            def probe(x_ref, o_ref):
                o_ref[...] = pltpu.roll(x_ref[...], shift=1, axis=1)

            x = jnp.broadcast_to(jnp.arange(128, dtype=jnp.float32)[None, :],
                                 (8, 128))
            y = pl.pallas_call(
                probe, out_shape=jax.ShapeDtypeStruct((8, 128), jnp.float32))(x)
            # jnp.roll convention: out[1] == in[0] == 0.0
            _ROLL_LIKE_JNP = bool(jax.device_get(y)[0, 1] == 0.0)
        except Exception:
            _ROLL_LIKE_JNP = True
    return _ROLL_LIKE_JNP


def _vmem_capacity_bytes():
    try:
        return int(getattr(pltpu.get_tpu_info(), "vmem_capacity_bytes"))
    except Exception:
        return 64 * 1024 * 1024        # conservative fallback: v7x per-core VMEM


def _make_kernel(NB, C, H, W, roll_like_jnp):
    HW = H * W

    def kernel(x_ref, mask_ref, w3_ref, w1_ref, sh1_ref, sh2_ref,
               out_ref, patch_ref):
        # x_ref:   (NB, C, HW) f32      mask_ref: (9, HW) f32
        # w3_ref:  (C, 9*C)   bf16 (BN1 scale folded)
        # w1_ref:  (C, C)     bf16 (BN2 scale folded)
        # sh1/sh2: (C, 1)     f32  (folded conv bias + BN shift)
        # patch_ref: (9*C, NB*HW) f32 scratch (im2col), fully overwritten.
        x = x_ref[...]                             # (NB, C, HW)
        h = jnp.maximum(x, 0.0)                    # ReLU(x)

        # Build the 9 shifted windows in-register (XLU roll + lane masks) and
        # drop them straight into the im2col patch matrix.  No line buffer,
        # no zero-fill: every patch element is rewritten each grid step.
        for k, (dy, dx) in enumerate(TAPS):
            d = dy * W + dx
            shift = ((-d) if roll_like_jnp else d) % HW
            needs_mask = (dy != 0) or (dx != 0)
            if needs_mask:
                # Hoisted: one broadcast per tap, reused across all NB images.
                mk = jnp.broadcast_to(mask_ref[k:k + 1, :], (C, HW))
            for n in range(NB):                    # small static loop (NB<=32)
                hn = h[n]                          # (C, HW), free value slice
                sh = hn if d == 0 else pltpu.roll(hn, shift=shift, axis=1)
                if needs_mask:
                    sh = sh * mk
                patch_ref[k * C:(k + 1) * C, n * HW:(n + 1) * HW] = sh

        # 3x3 conv as ONE batched deep-K matmul over all NB images (bf16 MXU
        # operands, f32 accumulation); BN1 scale is folded into w3, so only
        # the additive shift + ReLU remain on the VPU.
        y = jnp.dot(w3_ref[...], patch_ref[...].astype(jnp.bfloat16),
                    preferred_element_type=jnp.float32)          # (C, NB*HW)
        y = jnp.maximum(y + sh1_ref[...], 0.0)
        # 1x1 conv (BN2 scale folded into w1) + folded bias/BN2 shift.
        y = jnp.dot(w1_ref[...], y.astype(jnp.bfloat16),
                    preferred_element_type=jnp.float32) + sh2_ref[...]

        # Residual add; lane-dense (HW-wide) per-image stores.
        for n in range(NB):
            out_ref[n] = x[n] + y[:, n * HW:(n + 1) * HW]

    return kernel


def resblock_forward(x_nchw, params, eps=1e-5, block_batch=None):
    """NCHW in, NCHW out.  Only free reshapes on the activations."""
    N, C, H, W = x_nchw.shape
    HW = H * W

    x = x_nchw.astype(jnp.float32).reshape(N, C, HW)       # free reshape

    # ---- fold conv biases + inference-mode BN into the weights / one affine
    s1 = params["bn1_gamma"] / jnp.sqrt(params["bn1_var"] + eps)
    t1 = params["bn1_beta"] - params["bn1_mean"] * s1
    s2 = params["bn2_gamma"] / jnp.sqrt(params["bn2_var"] + eps)
    t2 = params["bn2_beta"] - params["bn2_mean"] * s2

    shift1 = (params["conv3_b"] * s1 + t1).reshape(C, 1).astype(jnp.float32)
    shift2 = (params["conv1_b"] * s2 + t2).reshape(C, 1).astype(jnp.float32)

    # 3x3 weights -> im2col layout (C_out, 9*C), col = (ky*3+kx)*C + c_in,
    # with BN1 scale folded in; bf16 MXU operands.
    w3t = jnp.transpose(params["conv3_w"].astype(jnp.float32), (0, 2, 3, 1))
    w3f = (w3t.reshape(C, 9 * C) * s1[:, None]).astype(jnp.bfloat16)
    # 1x1 weights with BN2 scale folded into the output channels.
    w1f = (params["conv1_w"][:, :, 0, 0].astype(jnp.float32)
           * s2[:, None]).astype(jnp.bfloat16)

    # Per-tap boundary masks over the flattened spatial axis: zero the
    # W-boundary (dx) and H-boundary (dy) taps; this also covers the
    # wrap-around lanes introduced by the in-register roll.
    pos = jnp.arange(HW, dtype=jnp.int32)
    w_idx, h_idx = pos % W, pos // W
    rows = []
    for dy, dx in TAPS:
        m = jnp.ones((HW,), jnp.float32)
        if dx == -1:
            m = m * (w_idx >= 1)
        if dx == 1:
            m = m * (w_idx <= W - 2)
        if dy == -1:
            m = m * (h_idx >= 1)
        if dy == 1:
            m = m * (h_idx <= H - 2)
        rows.append(m)
    mask = jnp.stack(rows).astype(jnp.float32)               # (9, HW)

    # ---- block sizing: biggest batch block that fits the real per-step VMEM
    # footprint (2x double-buffered input + 2x output + im2col patch).  On
    # 2-TensorCore chips (v7x) keep >=2 grid blocks so both cores get work;
    # cost on single-TC chips is one extra ~0.35us grid step.
    vmem_cap = _vmem_capacity_bytes()
    if block_batch is None:
        per_img = C * HW * 4
        step_bytes_per_img = per_img * (2 + 2 + 9)   # in x2, out x2, 9C patch rows
        budget = max(vmem_cap // 3, 4 * 1024 * 1024)
        block_batch = max(1, min(N, budget // max(step_bytes_per_img, 1)))
        block_batch = min(block_batch, 32)           # bound static unroll size
        try:
            two_core = "7" in jax.devices()[0].device_kind
        except Exception:
            two_core = True
        if two_core and N >= 2:
            block_batch = min(block_batch, -(-N // 2))
    NB = block_batch
    n_blocks = -(-N // NB)
    Np = n_blocks * NB
    if Np != N:                                      # never degrade to NB=1
        x = jnp.pad(x, ((0, Np - N), (0, 0), (0, 0)))

    kernel = _make_kernel(NB, C, H, W, _roll_like_jnp())

    def rep(shape):                                  # grid-invariant operand
        return pl.BlockSpec(shape, lambda b: (0,) * len(shape))

    out = pl.pallas_call(
        kernel,
        out_shape=jax.ShapeDtypeStruct((Np, C, HW), jnp.float32),
        grid=(n_blocks,),
        in_specs=[
            pl.BlockSpec((NB, C, HW), lambda b: (b, 0, 0)),  # x
            rep((9, HW)),       # per-tap boundary masks
            rep((C, 9 * C)),    # folded 3x3 weights (im2col, bf16)
            rep((C, C)),        # folded 1x1 weights (bf16)
            rep((C, 1)),        # conv3 bias + BN1 shift (folded)
            rep((C, 1)),        # conv1 bias + BN2 shift (folded)
        ],
        out_specs=pl.BlockSpec((NB, C, HW), lambda b: (b, 0, 0)),
        scratch_shapes=[
            pltpu.VMEM((9 * C, NB * HW), jnp.float32),       # im2col patch
        ],
        compiler_params=pltpu.CompilerParams(
            dimension_semantics=("parallel",),
            vmem_limit_bytes=min(vmem_cap * 3 // 4, 96 * 1024 * 1024)),
    )(x, mask, w3f, w1f, shift1, shift2)

    return out[:N].reshape(N, C, H, W)               # free slice/reshape


def resblock_reference(x_nchw, params, eps=1e-5):
    """Pure-JAX reference (NCHW, mirrors the PyTorch forward in eval mode)."""
    def bn(y, g, b, m, v):
        return (y - m[None, :, None, None]) / jnp.sqrt(v + eps)[None, :, None, None] \
               * g[None, :, None, None] + b[None, :, None, None]

    h = jnp.maximum(x_nchw, 0.0)
    y = lax.conv_general_dilated(h, params["conv3_w"], (1, 1), ((1, 1), (1, 1)),
                                 dimension_numbers=("NCHW", "OIHW", "NCHW"))
    y = y + params["conv3_b"][None, :, None, None]
    y = bn(y, params["bn1_gamma"], params["bn1_beta"], params["bn1_mean"], params["bn1_var"])
    y = jnp.maximum(y, 0.0)
    y = lax.conv_general_dilated(y, params["conv1_w"], (1, 1), ((0, 0), (0, 0)),
                                 dimension_numbers=("NCHW", "OIHW", "NCHW"))
    y = y + params["conv1_b"][None, :, None, None]
    y = bn(y, params["bn2_gamma"], params["bn2_beta"], params["bn2_mean"], params["bn2_var"])
    return x_nchw + y


def make_params(key, dim):
    ks = jax.random.split(key, 10)
    return {
        "conv3_w": 0.1 * jax.random.normal(ks[0], (dim, dim, 3, 3), jnp.float32),
        "conv3_b": 0.1 * jax.random.normal(ks[1], (dim,), jnp.float32),
        "conv1_w": 0.1 * jax.random.normal(ks[2], (dim, dim, 1, 1), jnp.float32),
        "conv1_b": 0.1 * jax.random.normal(ks[3], (dim,), jnp.float32),
        "bn1_gamma": 1.0 + 0.1 * jax.random.normal(ks[4], (dim,), jnp.float32),
        "bn1_beta": 0.1 * jax.random.normal(ks[5], (dim,), jnp.float32),
        "bn1_mean": 0.1 * jax.random.normal(ks[6], (dim,), jnp.float32),
        "bn1_var": jax.random.uniform(ks[7], (dim,), jnp.float32, 0.5, 1.5),
        "bn2_gamma": 1.0 + 0.1 * jax.random.normal(ks[8], (dim,), jnp.float32),
        "bn2_beta": 0.1 * jax.random.normal(ks[9], (dim,), jnp.float32),
        "bn2_mean": jnp.zeros((dim,), jnp.float32),
        "bn2_var": jnp.ones((dim,), jnp.float32),
    }


if __name__ == "__main__":
    key = jax.random.PRNGKey(0)
    k_x, k_p = jax.random.split(key)

    N, C, H, W = 2, 4, 16, 16                 # PyTorch NCHW input
    x = jax.random.normal(k_x, (N, C, H, W), jnp.float32)
    params = make_params(k_p, C)

    out = jax.block_until_ready(resblock_forward(x, params))
    ref = resblock_reference(x, params)

    assert out.shape == (N, C, H, W)
    err = float(jnp.max(jnp.abs(out - ref)))
    # bf16 MXU operands (per perf review); tolerance reflects that.
    assert err < 2e-2, f"kernel output mismatch vs JAX reference (max abs err {err})"
    print("KERNEL_OK")
</pallas_src>

<mosaic_0001>
module attributes {stable_mosaic.version = 11 : i64} {
  func.func @probe(%arg0: memref<8x128xf32, #tpu.memory_space<vmem>>, %arg1: memref<8x128xf32, #tpu.memory_space<vmem>>) attributes {dimension_semantics = [], scalar_prefetch = 0 : i64, scratch_operands = 0 : i64, tpu.core_type = #tpu.core_type<tc>} {
    %c0 = arith.constant 0 : index
    %c0_0 = arith.constant 0 : index
    %0 = vector.load %arg0[%c0, %c0_0] : memref<8x128xf32, #tpu.memory_space<vmem>>, vector<8x128xf32>
    %c1_i32 = arith.constant 1 : i32
    %1 = tpu.dynamic_rotate %0 by %c1_i32 dim 1 : vector<8x128xf32>, i32 -> vector<8x128xf32>
    %c0_1 = arith.constant 0 : index
    %c0_2 = arith.constant 0 : index
    %2 = vector.load %arg1[%c0_1, %c0_2] : memref<8x128xf32, #tpu.memory_space<vmem>>, vector<8x128xf32>
    tpu.vector_store %arg1[%c0_1, %c0_2], %1 {strides = array<i32>} : memref<8x128xf32, #tpu.memory_space<vmem>>, vector<8x128xf32>,
    return
  }
}

module attributes {stable_mosaic.version = 11 : i64} {
  func.func @kernel(%arg0: i32, %arg1: memref<2x4x256xf32, #tpu.memory_space<vmem>>, %arg2: memref<9x256xf32, #tpu.memory_space<vmem>>, %arg3: memref<4x36xbf16, #tpu.memory_space<vmem>>, %arg4: memref<4x4xbf16, #tpu.memory_space<vmem>>, %arg5: memref<4x1xf32, #tpu.memory_space<vmem>>, %arg6: memref<4x1xf32, #tpu.memory_space<vmem>>, %arg7: memref<2x4x256xf32, #tpu.memory_space<vmem>>, %arg8: memref<36x512xf32, #tpu.memory_space<vmem>>) attributes {dimension_semantics = [#tpu.dimension_semantics<parallel>], iteration_bounds = array<i64: 1>, scalar_prefetch = 0 : i64, scratch_operands = 1 : i64, tpu.core_type = #tpu.core_type<tc>, window_params = [{transform_indices = @transform_0, window_bounds = array<i64: 2, 4, 256>}, {pipeline_mode = #tpu.pipeline_mode<synchronous>, transform_indices = @transform_1, window_bounds = array<i64: 9, 256>}, {pipeline_mode = #tpu.pipeline_mode<synchronous>, transform_indices = @transform_2, window_bounds = array<i64: 4, 36>}, {pipeline_mode = #tpu.pipeline_mode<synchronous>, transform_indices = @transform_3, window_bounds = array<i64: 4, 4>}, {pipeline_mode = #tpu.pipeline_mode<synchronous>, transform_indices = @transform_4, window_bounds = array<i64: 4, 1>}, {pipeline_mode = #tpu.pipeline_mode<synchronous>, transform_indices = @transform_5, window_bounds = array<i64: 4, 1>}, {transform_indices = @transform_6, window_bounds = array<i64: 2, 4, 256>}]} {
    %c0 = arith.constant 0 : index
    %c0_0 = arith.constant 0 : index
    %c0_1 = arith.constant 0 : index
    %0 = vector.load %arg1[%c0, %c0_0, %c0_1] : memref<2x4x256xf32, #tpu.memory_space<vmem>>, vector<2x4x256xf32>
    %cst = arith.constant 0.000000e+00 : f32
    %1 = vector.broadcast %cst : f32 to vector<2x4x256xf32>
    %2 = arith.maximumf %0, %1 : vector<2x4x256xf32>
    %c0_2 = arith.constant 0 : index
    %c0_3 = arith.constant 0 : index
    %3 = vector.load %arg2[%c0_2, %c0_3] : memref<9x256xf32, #tpu.memory_space<vmem>>, vector<1x256xf32>
    %4 = vector.shape_cast %3 : vector<1x256xf32> to vector<1x256xf32>
    %5 = vector.broadcast %4 : vector<1x256xf32> to vector<4x256xf32>
    %6 = vector.extract_strided_slice %2 {offsets = [0, 0, 0], sizes = [1, 4, 256], strides = [1, 1, 1]} : vector<2x4x256xf32> to vector<1x4x256xf32>
    %7 = vector.shape_cast %6 : vector<1x4x256xf32> to vector<4x256xf32>
    %c17_i32 = arith.constant 17 : i32
    %8 = tpu.dynamic_rotate %7 by %c17_i32 dim 1 : vector<4x256xf32>, i32 -> vector<4x256xf32>
    %9 = arith.mulf %8, %5 : vector<4x256xf32>
    %c0_4 = arith.constant 0 : index
    %c0_5 = arith.constant 0 : index
    %10 = vector.load %arg8[%c0_4, %c0_5] : memref<36x512xf32, #tpu.memory_space<vmem>>, vector<4x256xf32>
    tpu.vector_store %arg8[%c0_4, %c0_5], %9 {strides = array<i32>} : memref<36x512xf32, #tpu.memory_space<vmem>>, vector<4x256xf32>,
    %11 = vector.extract_strided_slice %2 {offsets = [1, 0, 0], sizes = [1, 4, 256], strides = [1, 1, 1]} : vector<2x4x256xf32> to vector<1x4x256xf32>
    %12 = vector.shape_cast %11 : vector<1x4x256xf32> to vector<4x256xf32>
    %c17_i32_6 = arith.constant 17 : i32
    %13 = tpu.dynamic_rotate %12 by %c17_i32_6 dim 1 : vector<4x256xf32>, i32 -> vector<4x256xf32>
    %14 = arith.mulf %13, %5 : vector<4x256xf32>
    %c0_7 = arith.constant 0 : index
    %c256 = arith.constant 256 : index
    %15 = vector.load %arg8[%c0_7, %c256] : memref<36x512xf32, #tpu.memory_space<vmem>>, vector<4x256xf32>
    tpu.vector_store %arg8[%c0_7, %c256], %14 {strides = array<i32>} : memref<36x512xf32, #tpu.memory_space<vmem>>, vector<4x256xf32>,
    %c1 = arith.constant 1 : index
    %c0_8 = arith.constant 0 : index
    %16 = vector.load %arg2[%c1, %c0_8] : memref<9x256xf32, #tpu.memory_space<vmem>>, vector<1x256xf32>
    %17 = vector.shape_cast %16 : vector<1x256xf32> to vector<1x256xf32>
    %18 = vector.broadcast %17 : vector<1x256xf32> to vector<4x256xf32>
    %19 = vector.extract_strided_slice %2 {offsets = [0, 0, 0], sizes = [1, 4, 256], strides = [1, 1, 1]} : vector<2x4x256xf32> to vector<1x4x256xf32>
    %20 = vector.shape_cast %19 : vector<1x4x256xf32> to vector<4x256xf32>
    %c16_i32 = arith.constant 16 : i32
    %21 = tpu.dynamic_rotate %20 by %c16_i32 dim 1 : vector<4x256xf32>, i32 -> vector<4x256xf32>
    %22 = arith.mulf %21, %18 : vector<4x256xf32>
    %c4 = arith.constant 4 : index
    %c0_9 = arith.constant 0 : index
    %23 = vector.load %arg8[%c4, %c0_9] : memref<36x512xf32, #tpu.memory_space<vmem>>, vector<4x256xf32>
    tpu.vector_store %arg8[%c4, %c0_9], %22 {strides = array<i32>} : memref<36x512xf32, #tpu.memory_space<vmem>>, vector<4x256xf32>,
    %24 = vector.extract_strided_slice %2 {offsets = [1, 0, 0], sizes = [1, 4, 256], strides = [1, 1, 1]} : vector<2x4x256xf32> to vector<1x4x256xf32>
    %25 = vector.shape_cast %24 : vector<1x4x256xf32> to vector<4x256xf32>
    %c16_i32_10 = arith.constant 16 : i32
    %26 = tpu.dynamic_rotate %25 by %c16_i32_10 dim 1 : vector<4x256xf32>, i32 -> vector<4x256xf32>
    %27 = arith.mulf %26, %18 : vector<4x256xf32>
    %c4_11 = arith.constant 4 : index
    %c256_12 = arith.constant 256 : index
    %28 = vector.load %arg8[%c4_11, %c256_12] : memref<36x512xf32, #tpu.memory_space<vmem>>, vector<4x256xf32>
    tpu.vector_store %arg8[%c4_11, %c256_12], %27 {strides = array<i32>} : memref<36x512xf32, #tpu.memory_space<vmem>>, vector<4x256xf32>,
    %c2 = arith.constant 2 : index
    %c0_13 = arith.constant 0 : index
    %29 = vector.load %arg2[%c2, %c0_13] : memref<9x256xf32, #tpu.memory_space<vmem>>, vector<1x256xf32>
    %30 = vector.shape_cast %29 : vector<1x256xf32> to vector<1x256xf32>
    %31 = vector.broadcast %30 : vector<1x256xf32> to vector<4x256xf32>
    %32 = vector.extract_strided_slice %2 {offsets = [0, 0, 0], sizes = [1, 4, 256], strides = [1, 1, 1]} : vector<2x4x256xf32> to vector<1x4x256xf32>
    %33 = vector.shape_cast %32 : vector<1x4x256xf32> to vector<4x256xf32>
    %c15_i32 = arith.constant 15 : i32
    %34 = tpu.dynamic_rotate %33 by %c15_i32 dim 1 : vector<4x256xf32>, i32 -> vector<4x256xf32>
    %35 = arith.mulf %34, %31 : vector<4x256xf32>
    %c8 = arith.constant 8 : index
    %c0_14 = arith.constant 0 : index
    %36 = vector.load %arg8[%c8, %c0_14] : memref<36x512xf32, #tpu.memory_space<vmem>>, vector<4x256xf32>
    tpu.vector_store %arg8[%c8, %c0_14], %35 {strides = array<i32>} : memref<36x512xf32, #tpu.memory_space<vmem>>, vector<4x256xf32>,
    %37 = vector.extract_strided_slice %2 {offsets = [1, 0, 0], sizes = [1, 4, 256], strides = [1, 1, 1]} : vector<2x4x256xf32> to vector<1x4x256xf32>
    %38 = vector.shape_cast %37 : vector<1x4x256xf32> to vector<4x256xf32>
    %c15_i32_15 = arith.constant 15 : i32
    %39 = tpu.dynamic_rotate %38 by %c15_i32_15 dim 1 : vector<4x256xf32>, i32 -> vector<4x256xf32>
    %40 = arith.mulf %39, %31 : vector<4x256xf32>
    %c8_16 = arith.constant 8 : index
    %c256_17 = arith.constant 256 : index
    %41 = vector.load %arg8[%c8_16, %c256_17] : memref<36x512xf32, #tpu.memory_space<vmem>>, vector<4x256xf32>
    tpu.vector_store %arg8[%c8_16, %c256_17], %40 {strides = array<i32>} : memref<36x512xf32, #tpu.memory_space<vmem>>, vector<4x256xf32>,
    %c3 = arith.constant 3 : index
    %c0_18 = arith.constant 0 : index
    %42 = vector.load %arg2[%c3, %c0_18] : memref<9x256xf32, #tpu.memory_space<vmem>>, vector<1x256xf32>
    %43 = vector.shape_cast %42 : vector<1x256xf32> to vector<1x256xf32>
    %44 = vector.broadcast %43 : vector<1x256xf32> to vector<4x256xf32>
    %45 = vector.extract_strided_slice %2 {offsets = [0, 0, 0], sizes = [1, 4, 256], strides = [1, 1, 1]} : vector<2x4x256xf32> to vector<1x4x256xf32>
    %46 = vector.shape_cast %45 : vector<1x4x256xf32> to vector<4x256xf32>
    %c1_i32 = arith.constant 1 : i32
    %47 = tpu.dynamic_rotate %46 by %c1_i32 dim 1 : vector<4x256xf32>, i32 -> vector<4x256xf32>
    %48 = arith.mulf %47, %44 : vector<4x256xf32>
    %c12 = arith.constant 12 : index
    %c0_19 = arith.constant 0 : index
    %49 = vector.load %arg8[%c12, %c0_19] : memref<36x512xf32, #tpu.memory_space<vmem>>, vector<4x256xf32>
    tpu.vector_store %arg8[%c12, %c0_19], %48 {strides = array<i32>} : memref<36x512xf32, #tpu.memory_space<vmem>>, vector<4x256xf32>,
    %50 = vector.extract_strided_slice %2 {offsets = [1, 0, 0], sizes = [1, 4, 256], strides = [1, 1, 1]} : vector<2x4x256xf32> to vector<1x4x256xf32>
    %51 = vector.shape_cast %50 : vector<1x4x256xf32> to vector<4x256xf32>
    %c1_i32_20 = arith.constant 1 : i32
    %52 = tpu.dynamic_rotate %51 by %c1_i32_20 dim 1 : vector<4x256xf32>, i32 -> vector<4x256xf32>
    %53 = arith.mulf %52, %44 : vector<4x256xf32>
    %c12_21 = arith.constant 12 : index
    %c256_22 = arith.constant 256 : index
    %54 = vector.load %arg8[%c12_21, %c256_22] : memref<36x512xf32, #tpu.memory_space<vmem>>, vector<4x256xf32>
    tpu.vector_store %arg8[%c12_21, %c256_22], %53 {strides = array<i32>} : memref<36x512xf32, #tpu.memory_space<vmem>>, vector<4x256xf32>,
    %55 = vector.extract_strided_slice %2 {offsets = [0, 0, 0], sizes = [1, 4, 256], strides = [1, 1, 1]} : vector<2x4x256xf32> to vector<1x4x256xf32>
    %56 = vector.shape_cast %55 : vector<1x4x256xf32> to vector<4x256xf32>
    %c16 = arith.constant 16 : index
    %c0_23 = arith.constant 0 : index
    %57 = vector.load %arg8[%c16, %c0_23] : memref<36x512xf32, #tpu.memory_space<vmem>>, vector<4x256xf32>
    tpu.vector_store %arg8[%c16, %c0_23], %56 {strides = array<i32>} : memref<36x512xf32, #tpu.memory_space<vmem>>, vector<4x256xf32>,
    %58 = vector.extract_strided_slice %2 {offsets = [1, 0, 0], sizes = [1, 4, 256], strides = [1, 1, 1]} : vector<2x4x256xf32> to vector<1x4x256xf32>
    %59 = vector.shape_cast %58 : vector<1x4x256xf32> to vector<4x256xf32>
    %c16_24 = arith.constant 16 : index
    %c256_25 = arith.constant 256 : index
    %60 = vector.load %arg8[%c16_24, %c256_25] : memref<36x512xf32, #tpu.memory_space<vmem>>, vector<4x256xf32>
    tpu.vector_store %arg8[%c16_24, %c256_25], %59 {strides = array<i32>} : memref<36x512xf32, #tpu.memory_space<vmem>>, vector<4x256xf32>,
    %c5 = arith.constant 5 : index
    %c0_26 = arith.constant 0 : index
    %61 = vector.load %arg2[%c5, %c0_26] : memref<9x256xf32, #tpu.memory_space<vmem>>, vector<1x256xf32>
    %62 = vector.shape_cast %61 : vector<1x256xf32> to vector<1x256xf32>
    %63 = vector.broadcast %62 : vector<1x256xf32> to vector<4x256xf32>
    %64 = vector.extract_strided_slice %2 {offsets = [0, 0, 0], sizes = [1, 4, 256], strides = [1, 1, 1]} : vector<2x4x256xf32> to vector<1x4x256xf32>
    %65 = vector.shape_cast %64 : vector<1x4x256xf32> to vector<4x256xf32>
    %c255_i32 = arith.constant 255 : i32
    %66 = tpu.dynamic_rotate %65 by %c255_i32 dim 1 : vector<4x256xf32>, i32 -> vector<4x256xf32>
    %67 = arith.mulf %66, %63 : vector<4x256xf32>
    %c20 = arith.constant 20 : index
    %c0_27 = arith.constant 0 : index
    %68 = vector.load %arg8[%c20, %c0_27] : memref<36x512xf32, #tpu.memory_space<vmem>>, vector<4x256xf32>
    tpu.vector_store %arg8[%c20, %c0_27], %67 {strides = array<i32>} : memref<36x512xf32, #tpu.memory_space<vmem>>, vector<4x256xf32>,
    %69 = vector.extract_strided_slice %2 {offsets = [1, 0, 0], sizes = [1, 4, 256], strides = [1, 1, 1]} : vector<2x4x256xf32> to vector<1x4x256xf32>
    %70 = vector.shape_cast %69 : vector<1x4x256xf32> to vector<4x256xf32>
    %c255_i32_28 = arith.constant 255 : i32
    %71 = tpu.dynamic_rotate %70 by %c255_i32_28 dim 1 : vector<4x256xf32>, i32 -> vector<4x256xf32>
    %72 = arith.mulf %71, %63 : vector<4x256xf32>
    %c20_29 = arith.constant 20 : index
    %c256_30 = arith.constant 256 : index
    %73 = vector.load %arg8[%c20_29, %c256_30] : memref<36x512xf32, #tpu.memory_space<vmem>>, vector<4x256xf32>
    tpu.vector_store %arg8[%c20_29, %c256_30], %72 {strides = array<i32>} : memref<36x512xf32, #tpu.memory_space<vmem>>, vector<4x256xf32>,
    %c6 = arith.constant 6 : index
    %c0_31 = arith.constant 0 : index
    %74 = vector.load %arg2[%c6, %c0_31] : memref<9x256xf32, #tpu.memory_space<vmem>>, vector<1x256xf32>
    %75 = vector.shape_cast %74 : vector<1x256xf32> to vector<1x256xf32>
    %76 = vector.broadcast %75 : vector<1x256xf32> to vector<4x256xf32>
    %77 = vector.extract_strided_slice %2 {offsets = [0, 0, 0], sizes = [1, 4, 256], strides = [1, 1, 1]} : vector<2x4x256xf32> to vector<1x4x256xf32>
    %78 = vector.shape_cast %77 : vector<1x4x256xf32> to vector<4x256xf32>
    %c241_i32 = arith.constant 241 : i32
    %79 = tpu.dynamic_rotate %78 by %c241_i32 dim 1 : vector<4x256xf32>, i32 -> vector<4x256xf32>
    %80 = arith.mulf %79, %76 : vector<4x256xf32>
    %c24 = arith.constant 24 : index
    %c0_32 = arith.constant 0 : index
    %81 = vector.load %arg8[%c24, %c0_32] : memref<36x512xf32, #tpu.memory_space<vmem>>, vector<4x256xf32>
    tpu.vector_store %arg8[%c24, %c0_32], %80 {strides = array<i32>} : memref<36x512xf32, #tpu.memory_space<vmem>>, vector<4x256xf32>,
    %82 = vector.extract_strided_slice %2 {offsets = [1, 0, 0], sizes = [1, 4, 256], strides = [1, 1, 1]} : vector<2x4x256xf32> to vector<1x4x256xf32>
    %83 = vector.shape_cast %82 : vector<1x4x256xf32> to vector<4x256xf32>
    %c241_i32_33 = arith.constant 241 : i32
    %84 = tpu.dynamic_rotate %83 by %c241_i32_33 dim 1 : vector<4x256xf32>, i32 -> vector<4x256xf32>
    %85 = arith.mulf %84, %76 : vector<4x256xf32>
    %c24_34 = arith.constant 24 : index
    %c256_35 = arith.constant 256 : index
    %86 = vector.load %arg8[%c24_34, %c256_35] : memref<36x512xf32, #tpu.memory_space<vmem>>, vector<4x256xf32>
    tpu.vector_store %arg8[%c24_34, %c256_35], %85 {strides = array<i32>} : memref<36x512xf32, #tpu.memory_space<vmem>>, vector<4x256xf32>,
    %c7 = arith.constant 7 : index
    %c0_36 = arith.constant 0 : index
    %87 = vector.load %arg2[%c7, %c0_36] : memref<9x256xf32, #tpu.memory_space<vmem>>, vector<1x256xf32>
    %88 = vector.shape_cast %87 : vector<1x256xf32> to vector<1x256xf32>
    %89 = vector.broadcast %88 : vector<1x256xf32> to vector<4x256xf32>
    %90 = vector.extract_strided_slice %2 {offsets = [0, 0, 0], sizes = [1, 4, 256], strides = [1, 1, 1]} : vector<2x4x256xf32> to vector<1x4x256xf32>
    %91 = vector.shape_cast %90 : vector<1x4x256xf32> to vector<4x256xf32>
    %c240_i32 = arith.constant 240 : i32
    %92 = tpu.dynamic_rotate %91 by %c240_i32 dim 1 : vector<4x256xf32>, i32 -> vector<4x256xf32>
    %93 = arith.mulf %92, %89 : vector<4x256xf32>
    %c28 = arith.constant 28 : index
    %c0_37 = arith.constant 0 : index
    %94 = vector.load %arg8[%c28, %c0_37] : memref<36x512xf32, #tpu.memory_space<vmem>>, vector<4x256xf32>
    tpu.vector_store %arg8[%c28, %c0_37], %93 {strides = array<i32>} : memref<36x512xf32, #tpu.memory_space<vmem>>, vector<4x256xf32>,
    %95 = vector.extract_strided_slice %2 {offsets = [1, 0, 0], sizes = [1, 4, 256], strides = [1, 1, 1]} : vector<2x4x256xf32> to vector<1x4x256xf32>
    %96 = vector.shape_cast %95 : vector<1x4x256xf32> to vector<4x256xf32>
    %c240_i32_38 = arith.constant 240 : i32
    %97 = tpu.dynamic_rotate %96 by %c240_i32_38 dim 1 : vector<4x256xf32>, i32 -> vector<4x256xf32>
    %98 = arith.mulf %97, %89 : vector<4x256xf32>
    %c28_39 = arith.constant 28 : index
    %c256_40 = arith.constant 256 : index
    %99 = vector.load %arg8[%c28_39, %c256_40] : memref<36x512xf32, #tpu.memory_space<vmem>>, vector<4x256xf32>
    tpu.vector_store %arg8[%c28_39, %c256_40], %98 {strides = array<i32>} : memref<36x512xf32, #tpu.memory_space<vmem>>, vector<4x256xf32>,
    %c8_41 = arith.constant 8 : index
    %c0_42 = arith.constant 0 : index
    %100 = vector.load %arg2[%c8_41, %c0_42] : memref<9x256xf32, #tpu.memory_space<vmem>>, vector<1x256xf32>
    %101 = vector.shape_cast %100 : vector<1x256xf32> to vector<1x256xf32>
    %102 = vector.broadcast %101 : vector<1x256xf32> to vector<4x256xf32>
    %103 = vector.extract_strided_slice %2 {offsets = [0, 0, 0], sizes = [1, 4, 256], strides = [1, 1, 1]} : vector<2x4x256xf32> to vector<1x4x256xf32>
    %104 = vector.shape_cast %103 : vector<1x4x256xf32> to vector<4x256xf32>
    %c239_i32 = arith.constant 239 : i32
    %105 = tpu.dynamic_rotate %104 by %c239_i32 dim 1 : vector<4x256xf32>, i32 -> vector<4x256xf32>
    %106 = arith.mulf %105, %102 : vector<4x256xf32>
    %c32 = arith.constant 32 : index
    %c0_43 = arith.constant 0 : index
    %107 = vector.load %arg8[%c32, %c0_43] : memref<36x512xf32, #tpu.memory_space<vmem>>, vector<4x256xf32>
    tpu.vector_store %arg8[%c32, %c0_43], %106 {strides = array<i32>} : memref<36x512xf32, #tpu.memory_space<vmem>>, vector<4x256xf32>,
    %108 = vector.extract_strided_slice %2 {offsets = [1, 0, 0], sizes = [1, 4, 256], strides = [1, 1, 1]} : vector<2x4x256xf32> to vector<1x4x256xf32>
    %109 = vector.shape_cast %108 : vector<1x4x256xf32> to vector<4x256xf32>
    %c239_i32_44 = arith.constant 239 : i32
    %110 = tpu.dynamic_rotate %109 by %c239_i32_44 dim 1 : vector<4x256xf32>, i32 -> vector<4x256xf32>
    %111 = arith.mulf %110, %102 : vector<4x256xf32>
    %c32_45 = arith.constant 32 : index
    %c256_46 = arith.constant 256 : index
    %112 = vector.load %arg8[%c32_45, %c256_46] : memref<36x512xf32, #tpu.memory_space<vmem>>, vector<4x256xf32>
    tpu.vector_store %arg8[%c32_45, %c256_46], %111 {strides = array<i32>} : memref<36x512xf32, #tpu.memory_space<vmem>>, vector<4x256xf32>,
    %c0_47 = arith.constant 0 : index
    %c0_48 = arith.constant 0 : index
    %113 = vector.load %arg3[%c0_47, %c0_48] : memref<4x36xbf16, #tpu.memory_space<vmem>>, vector<4x36xbf16>
    %c0_49 = arith.constant 0 : index
    %c0_50 = arith.constant 0 : index
    %114 = vector.load %arg8[%c0_49, %c0_50] : memref<36x512xf32, #tpu.memory_space<vmem>>, vector<36x512xf32>
    %115 = arith.truncf %114 : vector<36x512xf32> to vector<36x512xbf16>
    %cst_51 = arith.constant dense<0.000000e+00> : vector<4x512xf32>
    %116 = tpu.matmul %113, %115, %cst_51 {dimension_numbers = #tpu.dot_dimension_numbers<[1], [0], [0], [1], [0, 0, 1, 1], [], []>} : vector<4x36xbf16>, vector<36x512xbf16>, vector<4x512xf32> -> vector<4x512xf32>
    %c0_52 = arith.constant 0 : index
    %c0_53 = arith.constant 0 : index
    %117 = vector.load %arg5[%c0_52, %c0_53] : memref<4x1xf32, #tpu.memory_space<vmem>>, vector<4x1xf32>
    %118 = vector.broadcast %117 : vector<4x1xf32> to vector<4x512xf32>
    %119 = arith.addf %116, %118 : vector<4x512xf32>
    %cst_54 = arith.constant 0.000000e+00 : f32
    %120 = vector.broadcast %cst_54 : f32 to vector<4x512xf32>
    %121 = arith.maximumf %119, %120 : vector<4x512xf32>
    %c0_55 = arith.constant 0 : index
    %c0_56 = arith.constant 0 : index
    %122 = vector.load %arg4[%c0_55, %c0_56] : memref<4x4xbf16, #tpu.memory_space<vmem>>, vector<4x4xbf16>
    %123 = arith.truncf %121 : vector<4x512xf32> to vector<4x512xbf16>
    %cst_57 = arith.constant dense<0.000000e+00> : vector<4x512xf32>
    %124 = tpu.matmul %122, %123, %cst_57 {dimension_numbers = #tpu.dot_dimension_numbers<[1], [0], [0], [1], [0, 0, 1, 1], [], []>} : vector<4x4xbf16>, vector<4x512xbf16>, vector<4x512xf32> -> vector<4x512xf32>
    %c0_58 = arith.constant 0 : index
    %c0_59 = arith.constant 0 : index
    %125 = vector.load %arg6[%c0_58, %c0_59] : memref<4x1xf32, #tpu.memory_space<vmem>>, vector<4x1xf32>
    %126 = vector.broadcast %125 : vector<4x1xf32> to vector<4x512xf32>
    %127 = arith.addf %124, %126 : vector<4x512xf32>
    %128 = vector.extract_strided_slice %0 {offsets = [0, 0, 0], sizes = [1, 4, 256], strides = [1, 1, 1]} : vector<2x4x256xf32> to vector<1x4x256xf32>
    %129 = vector.shape_cast %128 : vector<1x4x256xf32> to vector<4x256xf32>
    %130 = vector.extract_strided_slice %127 {offsets = [0, 0], sizes = [4, 256], strides = [1, 1]} : vector<4x512xf32> to vector<4x256xf32>
    %131 = arith.addf %129, %130 : vector<4x256xf32>
    %c0_60 = arith.constant 0 : index
    %c0_61 = arith.constant 0 : index
    %c0_62 = arith.constant 0 : index
    %132 = vector.load %arg7[%c0_60, %c0_61, %c0_62] : memref<2x4x256xf32, #tpu.memory_space<vmem>>, vector<1x4x256xf32>
    %133 = vector.shape_cast %132 : vector<1x4x256xf32> to vector<4x256xf32>
    %134 = vector.shape_cast %131 : vector<4x256xf32> to vector<1x4x256xf32>
    tpu.vector_store %arg7[%c0_60, %c0_61, %c0_62], %134 {strides = array<i32>} : memref<2x4x256xf32, #tpu.memory_space<vmem>>, vector<1x4x256xf32>,
    %135 = vector.extract_strided_slice %0 {offsets = [1, 0, 0], sizes = [1, 4, 256], strides = [1, 1, 1]} : vector<2x4x256xf32> to vector<1x4x256xf32>
    %136 = vector.shape_cast %135 : vector<1x4x256xf32> to vector<4x256xf32>
    %137 = vector.extract_strided_slice %127 {offsets = [0, 256], sizes = [4, 256], strides = [1, 1]} : vector<4x512xf32> to vector<4x256xf32>
    %138 = arith.addf %136, %137 : vector<4x256xf32>
    %c1_63 = arith.constant 1 : index
    %c0_64 = arith.constant 0 : index
    %c0_65 = arith.constant 0 : index
    %139 = vector.load %arg7[%c1_63, %c0_64, %c0_65] : memref<2x4x256xf32, #tpu.memory_space<vmem>>, vector<1x4x256xf32>
    %140 = vector.shape_cast %139 : vector<1x4x256xf32> to vector<4x256xf32>
    %141 = vector.shape_cast %138 : vector<4x256xf32> to vector<1x4x256xf32>
    tpu.vector_store %arg7[%c1_63, %c0_64, %c0_65], %141 {strides = array<i32>} : memref<2x4x256xf32, #tpu.memory_space<vmem>>, vector<1x4x256xf32>,
    return
  }
  func.func @transform_0(%arg0: i32) -> (i32, i32, i32) {
    %c0_i32 = arith.constant 0 : i32
    %c0_i32_0 = arith.constant 0 : i32
    %c0_i32_1 = arith.constant 0 : i32
    return %arg0, %c0_i32, %c0_i32_0 : i32, i32, i32
  }
  func.func @transform_1(%arg0: i32) -> (i32, i32) {
    %c0_i32 = arith.constant 0 : i32
    %c0_i32_0 = arith.constant 0 : i32
    %c0_i32_1 = arith.constant 0 : i32
    return %c0_i32, %c0_i32_0 : i32, i32
  }
  func.func @transform_2(%arg0: i32) -> (i32, i32) {
    %c0_i32 = arith.constant 0 : i32
    %c0_i32_0 = arith.constant 0 : i32
    %c0_i32_1 = arith.constant 0 : i32
    return %c0_i32, %c0_i32_0 : i32, i32
  }
  func.func @transform_3(%arg0: i32) -> (i32, i32) {
    %c0_i32 = arith.constant 0 : i32
    %c0_i32_0 = arith.constant 0 : i32
    %c0_i32_1 = arith.constant 0 : i32
    return %c0_i32, %c0_i32_0 : i32, i32
  }
  func.func @transform_4(%arg0: i32) -> (i32, i32) {
    %c0_i32 = arith.constant 0 : i32
    %c0_i32_0 = arith.constant 0 : i32
    %c0_i32_1 = arith.constant 0 : i32
    return %c0_i32, %c0_i32_0 : i32, i32
  }
  func.func @transform_5(%arg0: i32) -> (i32, i32) {
    %c0_i32 = arith.constant 0 : i32
    %c0_i32_0 = arith.constant 0 : i32
    %c0_i32_1 = arith.constant 0 : i32
    return %c0_i32, %c0_i32_0 : i32, i32
  }
  func.func @transform_6(%arg0: i32) -> (i32, i32, i32) {
    %c0_i32 = arith.constant 0 : i32
    %c0_i32_0 = arith.constant 0 : i32
    %c0_i32_1 = arith.constant 0 : i32
    return %arg0, %c0_i32, %c0_i32_0 : i32, i32, i32
  }
}

</mosaic_0001>

<llo_original>
// kernel: tpu_custom_call.1
$region0: #{tpu_custom_call.1}
  #allocation0 [shape = 'u32[]', space=smem, size = 0x4, offset = 0x4, fixed_abs, tag = 'smem constant byte address 0x4 - core index']
  #allocation1 [shape = 'u32[72,128]{1,0:T(1,128)}', space=vmem, size = 0x9000, scoped, tag = 'internal scratch']
  %s0 = inlined_call_operand.hbm [shape: f32[8,128], index: 0, kind: input, shape index: {}]
  %s1 = inlined_call_operand.hbm [shape: f32[8,128], index: 1, kind: output, shape index: {}]
  %s2 = sld [smem:[#allocation0]]
  $region18: #{tpu_custom_call.1} parent=0
    _
  %s4 = ssub.s32 1, %s2
  %s5 = scalar_select 0, %s4, %s2
  $region1: #{tpu_custom_call.1} parent=0
    #allocation2 [shape = 'u8[4096]{0}', space=vmem, size = 0x1000, scoped, tag = 'input window, operand 0, single buffered']
    #allocation3 [shape = 's32[1]{0}', space=sflag, size = 0x4, scoped, tag = 'scoped memory for tpu_custom_call.1']
    #allocation4 [shape = 's32[1]{0}', space=sflag, size = 0x4, scoped, tag = 'scoped memory for tpu_custom_call.1']
    #allocation5 [shape = 'u8[4096]{0}', space=vmem, size = 0x1000, scoped, tag = 'output window, operand 0, single buffered']
    %6 = vsyncpa [#allocation3], 0
    %7 = vsyncpa [#allocation4], 0
    // Predicated region
    $region2: #{tpu_custom_call.1} parent=1 // pred_check
      _
    $region3: #{tpu_custom_call.1} parent=1 // pred_check_branch
      %9 = sbr.rel (0) target = $region5
    $region4: #{tpu_custom_call.1} parent=1 // pred_region
      %11 = vsyncadd [#allocation3], 0
      %s13 = sshll.u32 %s0, 4
      %s14 = int_to_ptr.hbm [resolvable:$true] %s13
      %s15 = sshll.u32 [#allocation2], 4
      %s16 = int_to_ptr.vmem [resolvable:$true] %s15
      %18 = dma.hbm_to_vmem [thread:$0]  %s14, 128, %s16, [#allocation3]
    $region5: #{tpu_custom_call.1} parent=1 // pred_fallthru
      _
    // Predicated region
    $region6: #{tpu_custom_call.1} parent=1 // pred_check
      _
    $region7: #{tpu_custom_call.1} parent=1 // pred_check_branch
      %20 = sbr.rel (0) target = $region9
    $region8: #{tpu_custom_call.1} parent=1 // pred_region
      %22 = dma.done [#allocation3], 128
    $region9: #{tpu_custom_call.1} parent=1 // pred_fallthru
      _
    %v23 = vld [vmem:[#allocation2] sm:$0xff]
    %24 = vrot.lane.b32.xlu0 %v23, 1
    %v25 = vpop.permute.xlu0 %24
    %26 = vst [vmem:[#allocation5] sm:$0xff] %v25
    // Predicated region
    $region10: #{tpu_custom_call.1} parent=1 // pred_check
      _
    $region11: #{tpu_custom_call.1} parent=1 // pred_check_branch
      %28 = sbr.rel (0) target = $region13
    $region12: #{tpu_custom_call.1} parent=1 // pred_region
      %30 = vsyncadd [#allocation4], 0
      %s32 = sshll.u32 [#allocation5], 4
      %s33 = int_to_ptr.vmem [resolvable:$true] %s32
      %s34 = sshll.u32 %s1, 4
      %s35 = int_to_ptr.hbm [resolvable:$true] %s34
      %37 = dma.vmem_to_hbm [thread:$0]  %s33, 128, %s35, [#allocation4]
    $region13: #{tpu_custom_call.1} parent=1 // pred_fallthru
      _
    // Predicated region
    $region14: #{tpu_custom_call.1} parent=1 // pred_check
      _
    $region15: #{tpu_custom_call.1} parent=1 // pred_check_branch
      %39 = sbr.rel (0) target = $region17
    $region16: #{tpu_custom_call.1} parent=1 // pred_region
      %41 = dma.done [#allocation4], 128
    $region17: #{tpu_custom_call.1} parent=1 // pred_fallthru
      _
    %42 = vsyncpa [#allocation3], 1
    %43 = vsyncpa [#allocation4], 1

// kernel: tpu_custom_call.1
$region0: #{tpu_custom_call.1}
  #allocation0 [shape = 'u32[]', space=smem, size = 0x4, offset = 0x4, fixed_abs, tag = 'smem constant byte address 0x4 - core index']
  #allocation1 [shape = 'u32[72,128]{1,0:T(1,128)}', space=vmem, size = 0x9000, scoped, tag = 'internal scratch']
  #allocation2 [shape = 'f32[36,512]{1,0:T(8,128)}', space=vmem, size = 0x14000, scoped, tag = 'scratch operand']
  %s0 = inlined_call_operand.hbm [shape: f32[2,4,256], index: 0, kind: input, shape index: {}]
  %s1 = inlined_call_operand.hbm [shape: f32[9,256], index: 1, kind: input, shape index: {}]
  %s2 = inlined_call_operand.vmem [shape: bf16[4,36], index: 2, kind: input, shape index: {}]
  %s3 = inlined_call_operand.vmem [shape: bf16[4,4], index: 3, kind: input, shape index: {}]
  %s4 = inlined_call_operand.vmem [shape: f32[4,1], index: 4, kind: input, shape index: {}]
  %s5 = inlined_call_operand.vmem [shape: f32[4,1], index: 5, kind: input, shape index: {}]
  %s6 = inlined_call_operand.hbm [shape: f32[2,4,256], index: 6, kind: output, shape index: {}]
  %s7 = sld [smem:[#allocation0]]
  $region42: #{tpu_custom_call.1} parent=0
    _
  %s9 = ssub.s32 1, %s7
  %s10 = scalar_select 0, %s9, %s7
  $region1: #{tpu_custom_call.1} parent=0
    #allocation3 [shape = 'u8[8192]{0}', space=vmem, size = 0x2000, scoped, tag = 'input window, operand 0, single buffered']
    #allocation4 [shape = 's32[1]{0}', space=sflag, size = 0x4, scoped, tag = 'scoped memory for tpu_custom_call.1']
    #allocation5 [shape = 's32[1]{0}', space=sflag, size = 0x4, scoped, tag = 'scoped memory for tpu_custom_call.1']
    #allocation6 [shape = 'u8[16384]{0}', space=vmem, size = 0x4000, scoped, tag = 'input window, operand 1, single buffered']
    #allocation7 [shape = 's32[1]{0}', space=sflag, size = 0x4, scoped, tag = 'scoped memory for tpu_custom_call.1']
    #allocation8 [shape = 'u8[8192]{0}', space=vmem, size = 0x2000, scoped, tag = 'output window, operand 0, single buffered']
    %11 = vsyncpa [#allocation4], 0
    %12 = vsyncpa [#allocation7], 0
    %13 = vsyncpa [#allocation5], 0
    // Predicated region
    $region2: #{tpu_custom_call.1} parent=1 // pred_check
      _
    $region3: #{tpu_custom_call.1} parent=1 // pred_check_branch
      %15 = sbr.rel (0) target = $region5
    $region4: #{tpu_custom_call.1} parent=1 // pred_region
      %17 = vsyncadd [#allocation4], 0
      %s18 = sshll.u32 %s0, 4
      %s19 = int_to_ptr.hbm [resolvable:$true] %s18
      %s20 = sshll.u32 [#allocation3], 4
      %s21 = int_to_ptr.vmem [resolvable:$true] %s20
      %26 = dma.hbm_to_vmem [thread:$0]  %s19, 256, %s21, [#allocation4], 128, 128, 8
    $region5: #{tpu_custom_call.1} parent=1 // pred_fallthru
      _
    // Predicated region
    $region6: #{tpu_custom_call.1} parent=1 // pred_check
      _
    $region7: #{tpu_custom_call.1} parent=1 // pred_check_branch
      %28 = sbr.rel (0) target = $region9
    $region8: #{tpu_custom_call.1} parent=1 // pred_region
      %30 = vsyncadd [#allocation7], 0
      %s31 = sshll.u32 %s1, 4
      %s32 = int_to_ptr.hbm [resolvable:$true] %s31
      %s33 = sshll.u32 [#allocation6], 4
      %s34 = int_to_ptr.vmem [resolvable:$true] %s33
      %39 = dma.hbm_to_vmem [thread:$0]  %s32, 512, %s34, [#allocation7], 256, 256, 16
    $region9: #{tpu_custom_call.1} parent=1 // pred_fallthru
      _
    // Predicated region
    $region10: #{tpu_custom_call.1} parent=1 // pred_check
      _
    $region11: #{tpu_custom_call.1} parent=1 // pred_check_branch
      %41 = sbr.rel (0) target = $region13
    $region12: #{tpu_custom_call.1} parent=1 // pred_region
      _
    $region13: #{tpu_custom_call.1} parent=1 // pred_fallthru
      _
    // Predicated region
    $region14: #{tpu_custom_call.1} parent=1 // pred_check
      _
    $region15: #{tpu_custom_call.1} parent=1 // pred_check_branch
      %43 = sbr.rel (0) target = $region17
    $region16: #{tpu_custom_call.1} parent=1 // pred_region
      _
    $region17: #{tpu_custom_call.1} parent=1 // pred_fallthru
      _
    // Predicated region
    $region18: #{tpu_custom_call.1} parent=1 // pred_check
      _
    $region19: #{tpu_custom_call.1} parent=1 // pred_check_branch
      %45 = sbr.rel (0) target = $region21
    $region20: #{tpu_custom_call.1} parent=1 // pred_region
      _
    $region21: #{tpu_custom_call.1} parent=1 // pred_fallthru
      _
    // Predicated region
    $region22: #{tpu_custom_call.1} parent=1 // pred_check
      _
    $region23: #{tpu_custom_call.1} parent=1 // pred_check_branch
      %47 = sbr.rel (0) target = $region25
    $region24: #{tpu_custom_call.1} parent=1 // pred_region
      _
    $region25: #{tpu_custom_call.1} parent=1 // pred_fallthru
      _
    // Predicated region
    $region26: #{tpu_custom_call.1} parent=1 // pred_check
      _
    $region27: #{tpu_custom_call.1} parent=1 // pred_check_branch
      %49 = sbr.rel (0) target = $region29
    $region28: #{tpu_custom_call.1} parent=1 // pred_region
      %51 = dma.done [#allocation4], 256
    $region29: #{tpu_custom_call.1} parent=1 // pred_fallthru
      _
    // Predicated region
    $region30: #{tpu_custom_call.1} parent=1 // pred_check
      _
    $region31: #{tpu_custom_call.1} parent=1 // pred_check_branch
      %53 = sbr.rel (0) target = $region33
    $region32: #{tpu_custom_call.1} parent=1 // pred_region
      %55 = dma.done [#allocation7], 512
    $region33: #{tpu_custom_call.1} parent=1 // pred_fallthru
      _
    %v57 = vld [vmem:[#allocation3] sm:$0xff]
    %v58 = vld [vmem:[#allocation3 + $0x8] sm:$0xff]
    %v59 = vmax.f32 %v57, 0.0
    %v60 = vmax.f32 %v58, 0.0
    %v61 = vld [vmem:[#allocation6] ss:$8 sm:$0x3]
    %v63 = vperm.slane %v61, 0
    %v64 = vperm.slane %v61, 1
    %68 = vst [vmem:[#allocation1] ss:$2 sm:$0xff] %v59
    %v69 = vld.sshfl [vmem:[#allocation1] sm:$0xff pattern:$0x75316420]
    %v70 = vld.sshfl [vmem:[#allocation1 + $0x8] sm:$0xff pattern:$0x75316420]
    %73 = vrot.lane.b32.xlu0 %v69, 17
    %v74 = vpop.permute.xlu0 %73
    %75 = vrot.lane.b32.xlu0 %v70, 17
    %v76 = vpop.permute.xlu0 %75
    %v77 = vlaneseq
    %v78 = vand.u32 %v77, 127
    %vm79 = vcmp.lt.s32.totalorder %v78, 17
    %v80 = vsel %vm79, %v74, %v76
    %v81 = vsel %vm79, %v76, %v74
    %v82 = vmul.f32 %v81, %v63
    %v83 = vmul.f32 %v80, %v64
    %84 = vst [vmem:[#allocation2] sm:$0xf] %v82
    %85 = vst [vmem:[#allocation2 + $0x8] sm:$0xf] %v83
    %87 = vst [vmem:[#allocation1] ss:$2 sm:$0xff] %v60
    %v88 = vld.sshfl [vmem:[#allocation1] sm:$0xff pattern:$0x75316420]
    %v89 = vld.sshfl [vmem:[#allocation1 + $0x8] sm:$0xff pattern:$0x75316420]
    %92 = vrot.lane.b32.xlu0 %v88, 17
    %v93 = vpop.permute.xlu0 %92
    %94 = vrot.lane.b32.xlu0 %v89, 17
    %v95 = vpop.permute.xlu0 %94
    %v96 = vsel %vm79, %v93, %v95
    %v97 = vsel %vm79, %v95, %v93
    %v98 = vmul.f32 %v97, %v63
    %v99 = vmul.f32 %v96, %v64
    %100 = vst [vmem:[#allocation2 + $0x10] sm:$0xf] %v98
    %101 = vst [vmem:[#allocation2 + $0x18] sm:$0xf] %v99
    %s102 = scalar_lea.vmem [#allocation6], 1
    %v103 = vld [vmem:[%s102] ss:$8 sm:$0x3]
    %v105 = vperm.slane %v103, 0
    %v106 = vperm.slane %v103, 1
    %109 = vst [vmem:[#allocation1] ss:$2 sm:$0xff] %v59
    %v110 = vld.sshfl [vmem:[#allocation1] sm:$0xff pattern:$0x75316420]
    %v111 = vld.sshfl [vmem:[#allocation1 + $0x8] sm:$0xff pattern:$0x75316420]
    %114 = vrot.lane.b32.xlu0 %v110, 16
    %v115 = vpop.permute.xlu0 %114
    %116 = vrot.lane.b32.xlu0 %v111, 16
    %v117 = vpop.permute.xlu0 %116
    %vm118 = vcmp.lt.s32.totalorder %v78, 16
    %v119 = vsel %vm118, %v115, %v117
    %v120 = vsel %vm118, %v117, %v115
    %v121 = vmul.f32 %v120, %v105
    %v122 = vmul.f32 %v119, %v106
    %v125 = vrot.slane %v121, 4
    %v126 = vrot.slane %v122, 4
    %129 = vst [vmem:[#allocation2] sm:$0xf0] %v125
    %130 = vst [vmem:[#allocation2 + $0x8] sm:$0xf0] %v126
    %131 = vst [vmem:[#allocation1] ss:$2 sm:$0xff] %v60
    %v132 = vld.sshfl [vmem:[#allocation1] sm:$0xff pattern:$0x75316420]
    %v133 = vld.sshfl [vmem:[#allocation1 + $0x8] sm:$0xff pattern:$0x75316420]
    %136 = vrot.lane.b32.xlu0 %v132, 16
    %v137 = vpop.permute.xlu0 %136
    %138 = vrot.lane.b32.xlu0 %v133, 16
    %v139 = vpop.permute.xlu0 %138
    %v140 = vsel %vm118, %v137, %v139
    %v141 = vsel %vm118, %v139, %v137
    %v142 = vmul.f32 %v141, %v105
    %v143 = vmul.f32 %v140, %v106
    %v146 = vrot.slane %v142, 4
    %v147 = vrot.slane %v143, 4
    %150 = vst [vmem:[#allocation2 + $0x10] sm:$0xf0] %v146
    %151 = vst [vmem:[#allocation2 + $0x18] sm:$0xf0] %v147
    %s152 = scalar_lea.vmem [#allocation6], 2
    %v153 = vld [vmem:[%s152] ss:$8 sm:$0x3]
    %v155 = vperm.slane %v153, 0
    %v156 = vperm.slane %v153, 1
    %159 = vst [vmem:[#allocation1] ss:$2 sm:$0xff] %v59
    %v160 = vld.sshfl [vmem:[#allocation1] sm:$0xff pattern:$0x75316420]
    %v161 = vld.sshfl [vmem:[#allocation1 + $0x8] sm:$0xff pattern:$0x75316420]
    %164 = vrot.lane.b32.xlu0 %v160, 15
    %v165 = vpop.permute.xlu0 %164
    %166 = vrot.lane.b32.xlu0 %v161, 15
    %v167 = vpop.permute.xlu0 %166
    %vm168 = vcmp.lt.s32.totalorder %v78, 15
    %v169 = vsel %vm168, %v165, %v167
    %v170 = vsel %vm168, %v167, %v165
    %v171 = vmul.f32 %v170, %v155
    %v172 = vmul.f32 %v169, %v156
    %173 = vst [vmem:[#allocation2 + $0x20] sm:$0xf] %v171
    %174 = vst [vmem:[#allocation2 + $0x28] sm:$0xf] %v172
    %175 = vst [vmem:[#allocation1] ss:$2 sm:$0xff] %v60
    %v176 = vld.sshfl [vmem:[#allocation1] sm:$0xff pattern:$0x75316420]
    %v177 = vld.sshfl [vmem:[#allocation1 + $0x8] sm:$0xff pattern:$0x75316420]
    %180 = vrot.lane.b32.xlu0 %v176, 15
    %v181 = vpop.permute.xlu0 %180
    %182 = vrot.lane.b32.xlu0 %v177, 15
    %v183 = vpop.permute.xlu0 %182
    %v184 = vsel %vm168, %v181, %v183
    %v185 = vsel %vm168, %v183, %v181
    %v186 = vmul.f32 %v185, %v155
    %v187 = vmul.f32 %v184, %v156
    %188 = vst [vmem:[#allocation2 + $0x30] sm:$0xf] %v186
    %189 = vst [vmem:[#allocation2 + $0x38] sm:$0xf] %v187
    %s190 = scalar_lea.vmem [#allocation6], 3
    %v191 = vld [vmem:[%s190] ss:$8 sm:$0x3]
    %v193 = vperm.slane %v191, 0
    %v194 = vperm.slane %v191, 1
    %197 = vst [vmem:[#allocation1] ss:$2 sm:$0xff] %v59
    %v198 = vld.sshfl [vmem:[#allocation1] sm:$0xff pattern:$0x75316420]
    %v199 = vld.sshfl [vmem:[#allocation1 + $0x8] sm:$0xff pattern:$0x75316420]
    %202 = vrot.lane.b32.xlu0 %v198, 1
    %v203 = vpop.permute.xlu0 %202
    %204 = vrot.lane.b32.xlu0 %v199, 1
    %v205 = vpop.permute.xlu0 %204
    %vm206 = vcmp.lt.s32.totalorder %v78, 1
    %v207 = vsel %vm206, %v203, %v205
    %v208 = vsel %vm206, %v205, %v203
    %v209 = vmul.f32 %v208, %v193
    %v210 = vmul.f32 %v207, %v194
    %v213 = vrot.slane %v209, 4
    %v214 = vrot.slane %v210, 4
    %217 = vst [vmem:[#allocation2 + $0x20] sm:$0xf0] %v213
    %218 = vst [vmem:[#allocation2 + $0x28] sm:$0xf0] %v214
    %219 = vst [vmem:[#allocation1] ss:$2 sm:$0xff] %v60
    %v220 = vld.sshfl [vmem:[#allocation1] sm:$0xff pattern:$0x75316420]
    %v221 = vld.sshfl [vmem:[#allocation1 + $0x8] sm:$0xff pattern:$0x75316420]
    %224 = vrot.lane.b32.xlu0 %v220, 1
    %v225 = vpop.permute.xlu0 %224
    %226 = vrot.lane.b32.xlu0 %v221, 1
    %v227 = vpop.permute.xlu0 %226
    %v228 = vsel %vm206, %v225, %v227
    %v229 = vsel %vm206, %v227, %v225
    %v230 = vmul.f32 %v229, %v193
    %v231 = vmul.f32 %v228, %v194
    %v234 = vrot.slane %v230, 4
    %v235 = vrot.slane %v231, 4
    %238 = vst [vmem:[#allocation2 + $0x30] sm:$0xf0] %v234
    %239 = vst [vmem:[#allocation2 + $0x38] sm:$0xf0] %v235
    %240 = vst [vmem:[#allocation1] ss:$2 sm:$0xff] %v59
    %v241 = vld.sshfl [vmem:[#allocation1] sm:$0xff pattern:$0x75316420]
    %v242 = vld.sshfl [vmem:[#allocation1 + $0x8] sm:$0xff pattern:$0x75316420]
    %245 = vst [vmem:[#allocation2 + $0x40] sm:$0xf] %v241
    %246 = vst [vmem:[#allocation2 + $0x48] sm:$0xf] %v242
    %247 = vst [vmem:[#allocation1] ss:$2 sm:$0xff] %v60
    %v248 = vld.sshfl [vmem:[#allocation1] sm:$0xff pattern:$0x75316420]
    %v249 = vld.sshfl [vmem:[#allocation1 + $0x8] sm:$0xff pattern:$0x75316420]
    %252 = vst [vmem:[#allocation2 + $0x50] sm:$0xf] %v248
    %253 = vst [vmem:[#allocation2 + $0x58] sm:$0xf] %v249
    %s254 = scalar_lea.vmem [#allocation6], 5
    %v255 = vld [vmem:[%s254] ss:$8 sm:$0x3]
    %v257 = vperm.slane %v255, 0
    %v258 = vperm.slane %v255, 1
    %261 = vst [vmem:[#allocation1] ss:$2 sm:$0xff] %v59
    %v262 = vld.sshfl [vmem:[#allocation1] sm:$0xff pattern:$0x75316420]
    %v263 = vld.sshfl [vmem:[#allocation1 + $0x8] sm:$0xff pattern:$0x75316420]
    %266 = vrot.lane.b32.xlu0 %v262, 127
    %v267 = vpop.permute.xlu0 %266
    %268 = vrot.lane.b32.xlu0 %v263, 127
    %v269 = vpop.permute.xlu0 %268
    %vm270 = vcmp.lt.s32.totalorder %v78, 127
    %v271 = vsel %vm270, %v267, %v269
    %v272 = vsel %vm270, %v269, %v267
    %v273 = vmul.f32 %v271, %v257
    %v274 = vmul.f32 %v272, %v258
    %v277 = vrot.slane %v273, 4
    %v278 = vrot.slane %v274, 4
    %281 = vst [vmem:[#allocation2 + $0x40] sm:$0xf0] %v277
    %282 = vst [vmem:[#allocation2 + $0x48] sm:$0xf0] %v278
    %283 = vst [vmem:[#allocation1] ss:$2 sm:$0xff] %v60
    %v284 = vld.sshfl [vmem:[#allocation1] sm:$0xff pattern:$0x75316420]
    %v285 = vld.sshfl [vmem:[#allocation1 + $0x8] sm:$0xff pattern:$0x75316420]
    %288 = vrot.lane.b32.xlu0 %v284, 127
    %v289 = vpop.permute.xlu0 %288
    %290 = vrot.lane.b32.xlu0 %v285, 127
    %v291 = vpop.permute.xlu0 %290
    %v292 = vsel %vm270, %v289, %v291
    %v293 = vsel %vm270, %v291, %v289
    %v294 = vmul.f32 %v292, %v257
    %v295 = vmul.f32 %v293, %v258
    %v298 = vrot.slane %v294, 4
    %v299 = vrot.slane %v295, 4
    %302 = vst [vmem:[#allocation2 + $0x50] sm:$0xf0] %v298
    %303 = vst [vmem:[#allocation2 + $0x58] sm:$0xf0] %v299
    %s304 = scalar_lea.vmem [#allocation6], 6
    %v305 = vld [vmem:[%s304] ss:$8 sm:$0x3]
    %v307 = vperm.slane %v305, 0
    %v308 = vperm.slane %v305, 1
    %311 = vst [vmem:[#allocation1] ss:$2 sm:$0xff] %v59
    %v312 = vld.sshfl [vmem:[#allocation1] sm:$0xff pattern:$0x75316420]
    %v313 = vld.sshfl [vmem:[#allocation1 + $0x8] sm:$0xff pattern:$0x75316420]
    %316 = vrot.lane.b32.xlu0 %v312, 113
    %v317 = vpop.permute.xlu0 %316
    %318 = vrot.lane.b32.xlu0 %v313, 113
    %v319 = vpop.permute.xlu0 %318
    %vm320 = vcmp.lt.s32.totalorder %v78, 113
    %v321 = vsel %vm320, %v317, %v319
    %v322 = vsel %vm320, %v319, %v317
    %v323 = vmul.f32 %v321, %v307
    %v324 = vmul.f32 %v322, %v308
    %325 = vst [vmem:[#allocation2 + $0x60] sm:$0xf] %v323
    %326 = vst [vmem:[#allocation2 + $0x68] sm:$0xf] %v324
    %327 = vst [vmem:[#allocation1] ss:$2 sm:$0xff] %v60
    %v328 = vld.sshfl [vmem:[#allocation1] sm:$0xff pattern:$0x75316420]
    %v329 = vld.sshfl [vmem:[#allocation1 + $0x8] sm:$0xff pattern:$0x75316420]
    %332 = vrot.lane.b32.xlu0 %v328, 113
    %v333 = vpop.permute.xlu0 %332
    %334 = vrot.lane.b32.xlu0 %v329, 113
    %v335 = vpop.permute.xlu0 %334
    %v336 = vsel %vm320, %v333, %v335
    %v337 = vsel %vm320, %v335, %v333
    %v338 = vmul.f32 %v336, %v307
    %v339 = vmul.f32 %v337, %v308
    %340 = vst [vmem:[#allocation2 + $0x70] sm:$0xf] %v338
    %341 = vst [vmem:[#allocation2 + $0x78] sm:$0xf] %v339
    %s342 = scalar_lea.vmem [#allocation6], 7
    %v343 = vld [vmem:[%s342] ss:$8 sm:$0x3]
    %v345 = vperm.slane %v343, 0
    %v346 = vperm.slane %v343, 1
    %349 = vst [vmem:[#allocation1] ss:$2 sm:$0xff] %v59
    %v350 = vld.sshfl [vmem:[#allocation1] sm:$0xff pattern:$0x75316420]
    %v351 = vld.sshfl [vmem:[#allocation1 + $0x8] sm:$0xff pattern:$0x75316420]
    %354 = vrot.lane.b32.xlu0 %v350, 112
    %v355 = vpop.permute.xlu0 %354
    %356 = vrot.lane.b32.xlu0 %v351, 112
    %v357 = vpop.permute.xlu0 %356
    %vm358 = vcmp.lt.s32.totalorder %v78, 112
    %v359 = vsel %vm358, %v355, %v357
    %v360 = vsel %vm358, %v357, %v355
    %v361 = vmul.f32 %v359, %v345
    %v362 = vmul.f32 %v360, %v346
    %v365 = vrot.slane %v361, 4
    %v366 = vrot.slane %v362, 4
    %369 = vst [vmem:[#allocation2 + $0x60] sm:$0xf0] %v365
    %370 = vst [vmem:[#allocation2 + $0x68] sm:$0xf0] %v366
    %371 = vst [vmem:[#allocation1] ss:$2 sm:$0xff] %v60
    %v372 = vld.sshfl [vmem:[#allocation1] sm:$0xff pattern:$0x75316420]
    %v373 = vld.sshfl [vmem:[#allocation1 + $0x8] sm:$0xff pattern:$0x75316420]
    %376 = vrot.lane.b32.xlu0 %v372, 112
    %v377 = vpop.permute.xlu0 %376
    %378 = vrot.lane.b32.xlu0 %v373, 112
    %v379 = vpop.permute.xlu0 %378
    %v380 = vsel %vm358, %v377, %v379
    %v381 = vsel %vm358, %v379, %v377
    %v382 = vmul.f32 %v380, %v345
    %v383 = vmul.f32 %v381, %v346
    %v386 = vrot.slane %v382, 4
    %v387 = vrot.slane %v383, 4
    %390 = vst [vmem:[#allocation2 + $0x70] sm:$0xf0] %v386
    %391 = vst [vmem:[#allocation2 + $0x78] sm:$0xf0] %v387
    %s392 = scalar_lea.vmem [#allocation6], 16
    %v393 = vld [vmem:[%s392] ss:$8 sm:$0x3]
    %v395 = vperm.slane %v393, 0
    %v396 = vperm.slane %v393, 1
    %399 = vst [vmem:[#allocation1] ss:$2 sm:$0xff] %v59
    %v400 = vld.sshfl [vmem:[#allocation1] sm:$0xff pattern:$0x75316420]
    %v401 = vld.sshfl [vmem:[#allocation1 + $0x8] sm:$0xff pattern:$0x75316420]
    %404 = vrot.lane.b32.xlu0 %v400, 111
    %v405 = vpop.permute.xlu0 %404
    %406 = vrot.lane.b32.xlu0 %v401, 111
    %v407 = vpop.permute.xlu0 %406
    %vm408 = vcmp.lt.s32.totalorder %v78, 111
    %v409 = vsel %vm408, %v405, %v407
    %v410 = vsel %vm408, %v407, %v405
    %v411 = vmul.f32 %v409, %v395
    %v412 = vmul.f32 %v410, %v396
    %413 = vst [vmem:[#allocation2 + $0x80] sm:$0xf] %v411
    %414 = vst [vmem:[#allocation2 + $0x88] sm:$0xf] %v412
    %415 = vst [vmem:[#allocation1] ss:$2 sm:$0xff] %v60
    %v416 = vld.sshfl [vmem:[#allocation1] sm:$0xff pattern:$0x75316420]
    %v417 = vld.sshfl [vmem:[#allocation1 + $0x8] sm:$0xff pattern:$0x75316420]
    %420 = vrot.lane.b32.xlu0 %v416, 111
    %v421 = vpop.permute.xlu0 %420
    %422 = vrot.lane.b32.xlu0 %v417, 111
    %v423 = vpop.permute.xlu0 %422
    %v424 = vsel %vm408, %v421, %v423
    %v425 = vsel %vm408, %v423, %v421
    %v426 = vmul.f32 %v424, %v395
    %v427 = vmul.f32 %v425, %v396
    %428 = vst [vmem:[#allocation2 + $0x90] sm:$0xf] %v426
    %429 = vst [vmem:[#allocation2 + $0x98] sm:$0xf] %v427
    %v430 = vld [vmem:[%s2] sm:$0x3]
    %v431 = vld [vmem:[#allocation2] sm:$0xff]
    %v432 = vld [vmem:[#allocation2 + $0x8] sm:$0xff]
    %v433 = vld [vmem:[#allocation2 + $0x10] sm:$0xff]
    %v434 = vld [vmem:[#allocation2 + $0x18] sm:$0xff]
    %v435 = vld [vmem:[#allocation2 + $0x20] sm:$0xff]
    %v436 = vld [vmem:[#allocation2 + $0x28] sm:$0xff]
    %v437 = vld [vmem:[#allocation2 + $0x30] sm:$0xff]
    %v438 = vld [vmem:[#allocation2 + $0x38] sm:$0xff]
    %v439 = vld [vmem:[#allocation2 + $0x40] sm:$0xff]
    %v440 = vld [vmem:[#allocation2 + $0x48] sm:$0xff]
    %v441 = vld [vmem:[#allocation2 + $0x50] sm:$0xff]
    %v442 = vld [vmem:[#allocation2 + $0x58] sm:$0xff]
    %v443 = vld [vmem:[#allocation2 + $0x60] sm:$0xff]
    %v444 = vld [vmem:[#allocation2 + $0x68] sm:$0xff]
    %v445 = vld [vmem:[#allocation2 + $0x70] sm:$0xff]
    %v446 = vld [vmem:[#allocation2 + $0x78] sm:$0xff]
    %v447 = vld [vmem:[#allocation2 + $0x80] sm:$0xf]
    %v448 = vld [vmem:[#allocation2 + $0x88] sm:$0xf]
    %v449 = vld [vmem:[#allocation2 + $0x90] sm:$0xf]
    %v450 = vld [vmem:[#allocation2 + $0x98] sm:$0xf]
    %v451 = vpack.c.bf16 %v435, %v431
    %v452 = vpack.c.bf16 %v436, %v432
    %v453 = vpack.c.bf16 %v437, %v433
    %v454 = vpack.c.bf16 %v438, %v434
    %v455 = vpack.c.bf16 %v443, %v439
    %v456 = vpack.c.bf16 %v444, %v440
    %v457 = vpack.c.bf16 %v445, %v441
    %v458 = vpack.c.bf16 %v446, %v442
    %v459 = vpack.c.bf16 %v447, %v447
    %v460 = vpack.c.bf16 %v448, %v448
    %v461 = vpack.c.bf16 %v449, %v449
    %v462 = vpack.c.bf16 %v450, %v450
    %v463 = vld [vmem:[%s4] sm:$0xf]
    %465 = vset.pattern.permute.xlu0 0
    %466 = vperm.xlu0 %465, %v463
    %v467 = vpop.permute.xlu0 %466
    %vm469 = vcmask 293888
    %v471 = vsel %vm469, %v430, 0
    %vm473 = vcmask 1041408
    %v475 = vsel %vm473, %v459, 0
    %v478 = vsel %vm473, %v460, 0
    %v481 = vsel %vm473, %v461, 0
    %v484 = vsel %vm473, %v462, 0
    %486 = vmatpush.bf16.msra.mxu0 0
    %487 = vmatpush.bf16.msra.mxu0 0
    %488 = vmatpush.bf16.msra.mxu0 0
    %489 = vmatpush.bf16.msra.mxu0 0
    %490 = vmatpush.bf16.msra.mxu0 0
    %491 = vmatpush.bf16.msra.mxu0 %v475
    %492 = vmatpush.bf16.msra.mxu0 %v455
    %493 = vmatpush.bf16.msra.mxu0 %v451
    %494 = vmatmul.bf16.gmra.mxu0 %v471
    %v495 = vpop.f32.mrf.mxu0
    %v496 = vadd.f32 %v467, %v495
    %v497 = vpop.f32.mrf.mxu0
    %498 = vdwg.mxu0
    %499 = vmatpush.bf16.msra.mxu0 0
    %500 = vmatpush.bf16.msra.mxu0 0
    %501 = vmatpush.bf16.msra.mxu0 0
    %502 = vmatpush.bf16.msra.mxu0 0
    %503 = vmatpush.bf16.msra.mxu0 0
    %504 = vmatpush.bf16.msra.mxu0 %v478
    %505 = vmatpush.bf16.msra.mxu0 %v456
    %506 = vmatpush.bf16.msra.mxu0 %v452
    %507 = vmatmul.bf16.gmra.mxu0 %v471
    %v508 = vpop.f32.mrf.mxu0
    %v509 = vadd.f32 %v467, %v508
    %v510 = vpop.f32.mrf.mxu0
    %511 = vdwg.mxu0
    %512 = vmatpush.bf16.msra.mxu0 0
    %513 = vmatpush.bf16.msra.mxu0 0
    %514 = vmatpush.bf16.msra.mxu0 0
    %515 = vmatpush.bf16.msra.mxu0 0
    %516 = vmatpush.bf16.msra.mxu0 0
    %517 = vmatpush.bf16.msra.mxu0 %v481
    %518 = vmatpush.bf16.msra.mxu0 %v457
    %519 = vmatpush.bf16.msra.mxu0 %v453
    %520 = vmatmul.bf16.gmra.mxu0 %v471
    %v521 = vpop.f32.mrf.mxu0
    %v522 = vadd.f32 %v467, %v521
    %v523 = vpop.f32.mrf.mxu0
    %524 = vdwg.mxu0
    %525 = vmatpush.bf16.msra.mxu0 0
    %526 = vmatpush.bf16.msra.mxu0 0
    %527 = vmatpush.bf16.msra.mxu0 0
    %528 = vmatpush.bf16.msra.mxu0 0
    %529 = vmatpush.bf16.msra.mxu0 0
    %530 = vmatpush.bf16.msra.mxu0 %v484
    %531 = vmatpush.bf16.msra.mxu0 %v458
    %532 = vmatpush.bf16.msra.mxu0 %v454
    %533 = vmatmul.bf16.gmra.mxu0 %v471
    %v534 = vpop.f32.mrf.mxu0
    %v535 = vadd.f32 %v467, %v534
    %v536 = vpop.f32.mrf.mxu0
    %537 = vdwg.mxu0
    %v538 = vmax.f32 %v496, 0.0
    %v539 = vmax.f32 %v509, 0.0
    %v540 = vmax.f32 %v522, 0.0
    %v541 = vmax.f32 %v535, 0.0
    %v542 = vld [vmem:[%s3] sm:$0x3]
    %v543 = vpack.c.bf16 %v538, %v538
    %v544 = vpack.c.bf16 %v539, %v539
    %v545 = vpack.c.bf16 %v540, %v540
    %v546 = vpack.c.bf16 %v541, %v541
    %v547 = vld [vmem:[%s5] sm:$0xf]
    %549 = vset.pattern.permute.xlu0 0
    %550 = vperm.xlu0 %549, %v547
    %v551 = vpop.permute.xlu0 %550
    %vm553 = vcmask 31744
    %v555 = vsel %vm553, %v542, 0
    %v558 = vsel %vm473, %v543, 0
    %v561 = vsel %vm473, %v544, 0
    %v564 = vsel %vm473, %v545, 0
    %v567 = vsel %vm473, %v546, 0
    %569 = vmatpush.bf16.msra.mxu0 0
    %570 = vmatpush.bf16.msra.mxu0 0
    %571 = vmatpush.bf16.msra.mxu0 0
    %572 = vmatpush.bf16.msra.mxu0 0
    %573 = vmatpush.bf16.msra.mxu0 0
    %574 = vmatpush.bf16.msra.mxu0 0
    %575 = vmatpush.bf16.msra.mxu0 0
    %576 = vmatpush.bf16.msra.mxu0 %v558
    %577 = vmatmul.bf16.gmra.mxu0 %v555
    %v578 = vpop.f32.mrf.mxu0
    %v579 = vadd.f32 %v551, %v578
    %v580 = vpop.f32.mrf.mxu0
    %581 = vdwg.mxu0
    %582 = vmatpush.bf16.msra.mxu0 0
    %583 = vmatpush.bf16.msra.mxu0 0
    %584 = vmatpush.bf16.msra.mxu0 0
    %585 = vmatpush.bf16.msra.mxu0 0
    %586 = vmatpush.bf16.msra.mxu0 0
    %587 = vmatpush.bf16.msra.mxu0 0
    %588 = vmatpush.bf16.msra.mxu0 0
    %589 = vmatpush.bf16.msra.mxu0 %v561
    %590 = vmatmul.bf16.gmra.mxu0 %v555
    %v591 = vpop.f32.mrf.mxu0
    %v592 = vadd.f32 %v551, %v591
    %v593 = vpop.f32.mrf.mxu0
    %594 = vdwg.mxu0
    %595 = vmatpush.bf16.msra.mxu0 0
    %596 = vmatpush.bf16.msra.mxu0 0
    %597 = vmatpush.bf16.msra.mxu0 0
    %598 = vmatpush.bf16.msra.mxu0 0
    %599 = vmatpush.bf16.msra.mxu0 0
    %600 = vmatpush.bf16.msra.mxu0 0
    %601 = vmatpush.bf16.msra.mxu0 0
    %602 = vmatpush.bf16.msra.mxu0 %v564
    %603 = vmatmul.bf16.gmra.mxu0 %v555
    %v604 = vpop.f32.mrf.mxu0
    %v605 = vadd.f32 %v551, %v604
    %v606 = vpop.f32.mrf.mxu0
    %607 = vdwg.mxu0
    %608 = vmatpush.bf16.msra.mxu0 0
    %609 = vmatpush.bf16.msra.mxu0 0
    %610 = vmatpush.bf16.msra.mxu0 0
    %611 = vmatpush.bf16.msra.mxu0 0
    %612 = vmatpush.bf16.msra.mxu0 0
    %613 = vmatpush.bf16.msra.mxu0 0
    %614 = vmatpush.bf16.msra.mxu0 0
    %615 = vmatpush.bf16.msra.mxu0 %v567
    %616 = vmatmul.bf16.gmra.mxu0 %v555
    %v617 = vpop.f32.mrf.mxu0
    %v618 = vadd.f32 %v551, %v617
    %v619 = vpop.f32.mrf.mxu0
    %620 = vdwg.mxu0
    %v623 = vrot.slane %v592, 4
    %vm624 = vcmask 1043456
    %v625 = vsel %vm624, %v579, %v623
    %v627 = vadd.f32 %v57, %v625
    %628 = vst [vmem:[#allocation8] sm:$0xff] %v627
    %v631 = vrot.slane %v618, 4
    %v632 = vsel %vm624, %v605, %v631
    %v634 = vadd.f32 %v58, %v632
    %s635 = scalar_lea.vmem [#allocation8], 8
    %636 = vst [vmem:[%s635] sm:$0xff] %v634
    // Predicated region
    $region34: #{tpu_custom_call.1} parent=1 // pred_check
      _
    $region35: #{tpu_custom_call.1} parent=1 // pred_check_branch
      %638 = sbr.rel (0) target = $region37
    $region36: #{tpu_custom_call.1} parent=1 // pred_region
      %640 = vsyncadd [#allocation5], 0
      %s641 = sshll.u32 [#allocation8], 4
      %s642 = int_to_ptr.vmem [resolvable:$true] %s641
      %s643 = sshll.u32 %s6, 4
      %s644 = int_to_ptr.hbm [resolvable:$true] %s643
      %649 = dma.vmem_to_hbm [thread:$0]  %s642, 256, %s644, [#allocation5], 128, 128, 8
    $region37: #{tpu_custom_call.1} parent=1 // pred_fallthru
      _
    // Predicated region
    $region38: #{tpu_custom_call.1} parent=1 // pred_check
      _
    $region39: #{tpu_custom_call.1} parent=1 // pred_check_branch
      %651 = sbr.rel (0) target = $region41
    $region40: #{tpu_custom_call.1} parent=1 // pred_region
      %653 = dma.done [#allocation5], 256
    $region41: #{tpu_custom_call.1} parent=1 // pred_fallthru
      _
    %654 = vsyncpa [#allocation4], 1
    %655 = vsyncpa [#allocation7], 1
    %656 = vsyncpa [#allocation5], 1

</llo_original>
